<compile_context>
chip_gen: v7x
topology: tpu7x:2x2x1
jax: 0.10.0
libtpu: 0.0.40
codegen_flags: <defaults>
</compile_context>

<pallas_src>
import functools
import numpy as np
import jax
import jax.numpy as jnp
from jax.experimental import pallas as pl
from jax.experimental.pallas import tpu as pltpu


# ----------------------------- mask construction -----------------------------
def build_made_masks(ind_in, cond_in, hidden_sizes, nout, seed=0):
    """Replicates MADE.update_masks deterministically (numpy RandomState).

    NOTE: the reference snippet's `if self.nout > self.nin` check is buggy as
    written (nout=2 < nin=8 would skip replication and shape-mismatch the last
    layer); we follow standard MADE and replicate the last mask k=nout times.
    """
    nin = ind_in + cond_in
    rng = np.random.RandomState(seed)
    L = len(hidden_sizes)
    m = {}
    m[-1] = np.arange(nin)
    for l in range(L):
        m[l] = rng.randint(m[l - 1].min(), nin - 1, size=hidden_sizes[l])
    masks = [m[l - 1][:, None] <= m[l][None, :] for l in range(L)]
    masks.append(m[L - 1][:, None] < m[-1][None, :])
    k = (nout * ind_in) // nin
    if k > 1:
        masks[-1] = np.concatenate([masks[-1]] * k, axis=1)
    # MaskedLinear.set_mask stores mask.T -> shape (out_features, in_features)
    return [msk.astype(np.float32).T for msk in masks]


# --------------------------------- kernel ------------------------------------
def made_kernel(nin, compute_dtype,
                x_ref,
                w1_ref, b1_ref,
                w2_ref, b2_ref,
                w3_ref, b3_ref,
                z_ref):
    # x is (nin, block_m): features on sublanes, batch on lanes (lane-dense).
    x = x_ref[...]                         # f32, kept for the exact epilogue
    xc = x.astype(compute_dtype)           # bf16 operand for the MXU

    # layer 1: MaskedLinear (mask pre-folded into weight) + ReLU   (f32 accum)
    h = jnp.dot(w1_ref[...], xc, preferred_element_type=jnp.float32) + b1_ref[...]
    h = jnp.maximum(h, 0.0)

    # layer 2: MaskedLinear + ReLU
    h = jnp.dot(w2_ref[...], h.astype(compute_dtype),
                preferred_element_type=jnp.float32) + b2_ref[...]
    h = jnp.maximum(h, 0.0)

    # layer 3: MaskedLinear (no ReLU) -> (2*nin, block_m), f32
    transf = jnp.dot(w3_ref[...], h.astype(compute_dtype),
                     preferred_element_type=jnp.float32) + b3_ref[...]

    # nout == 2 path: z = (x - mu) * exp(-sigma)  (f32 sublane split at nin=8)
    mu = transf[:nin, :]
    sigma = transf[nin:, :]
    z_ref[...] = (x - mu) * jnp.exp(-sigma)


# -------------------------------- wrapper ------------------------------------
def made_forward(x, params, *, nin, block_m=None, use_bf16=True):
    """x: (B, nin) float32. params: w1,m1,b1,w2,m2,b2,w3,m3,b3 (PyTorch layout)."""
    B = x.shape[0]
    out_dim = params["w3"].shape[0]
    assert out_dim == 2 * nin, "nout == 2 path requires out_dim == 2*nin"

    # block_m: multiple of 256 (fills 256-wide MXU on v6e/v7x, amortizes the
    # ~0.35us per-step overhead), capped at 2048 to keep tiles modest.
    if block_m is None:
        block_m = min(2048, ((B + 255) // 256) * 256)
    assert block_m % 256 == 0, "block_m must be a multiple of 256"

    wdtype = jnp.bfloat16 if use_bf16 else jnp.float32

    # Fold static masks into weights once (trace time) and cast to bf16.
    w1m = (params["m1"] * params["w1"]).astype(wdtype)
    w2m = (params["m2"] * params["w2"]).astype(wdtype)
    w3m = (params["m3"] * params["w3"]).astype(wdtype)
    # Biases broadcast along the lane (batch) axis -> shape (out, 1), f32.
    b1 = params["b1"].reshape(-1, 1)
    b2 = params["b2"].reshape(-1, 1)
    b3 = params["b3"].reshape(-1, 1)

    # Pad batch to a multiple of block_m and transpose: batch -> lanes.
    # Single fused pad+transpose (no zeros alloc + dynamic-update-slice).
    B_pad = ((B + block_m - 1) // block_m) * block_m
    x_t = jnp.pad(x, ((0, B_pad - B), (0, 0))).T          # (nin, B_pad)

    grid = (B_pad // block_m,)

    def rep(shape):  # replicated blocks (constant index_map -> fetched once)
        return pl.BlockSpec(shape, lambda i: (0, 0))

    z_t = pl.pallas_call(
        functools.partial(made_kernel, nin, wdtype),
        out_shape=jax.ShapeDtypeStruct((nin, B_pad), jnp.float32),
        grid_spec=pl.GridSpec(
            grid=grid,
            in_specs=[
                pl.BlockSpec((nin, block_m), lambda i: (0, i)),   # x (lane-dense)
                rep(w1m.shape), rep(b1.shape),
                rep(w2m.shape), rep(b2.shape),
                rep(w3m.shape), rep(b3.shape),
            ],
            out_specs=pl.BlockSpec((nin, block_m), lambda i: (0, i)),
        ),
        compiler_params=pltpu.CompilerParams(
            dimension_semantics=("parallel",)),
    )(x_t, w1m, b1, w2m, b2, w3m, b3)

    # Layout plumbing back to (B, nin); drop padding columns.
    return z_t[:, :B].T


# ------------------------- plain-JAX reference check -------------------------
def made_reference(x, params, *, nin, wdtype=jnp.float32):
    """Mirrors the kernel's operand rounding (weights/activations -> wdtype,
    f32 accumulation) so the comparison isolates kernel correctness."""
    f32 = jnp.float32
    hp = jax.lax.Precision.HIGHEST

    def rnd(a):
        return a.astype(wdtype).astype(f32)

    w1 = rnd(params["m1"] * params["w1"])
    w2 = rnd(params["m2"] * params["w2"])
    w3 = rnd(params["m3"] * params["w3"])

    h = jnp.maximum(jnp.dot(rnd(x), w1.T, precision=hp) + params["b1"], 0.0)
    h = jnp.maximum(jnp.dot(rnd(h), w2.T, precision=hp) + params["b2"], 0.0)
    transf = jnp.dot(rnd(h), w3.T, precision=hp) + params["b3"]
    mu, sigma = transf[:, :nin], transf[:, nin:]
    return (x - mu) * jnp.exp(-sigma)


if __name__ == "__main__":
    # config
    ind_in, cond_in = 8, 0
    nin = ind_in + cond_in
    hidden_sizes = [32, 32]
    nout = 2
    out_dim = nout * ind_in
    B = 256  # demo batch -> block_m auto-selects 256 -> single grid step

    masks = build_made_masks(ind_in, cond_in, hidden_sizes, nout, seed=0)

    key = jax.random.PRNGKey(0)
    k1, k2, k3, k4, k5, k6, kx = jax.random.split(key, 7)

    def init_w(k, out_f, in_f):
        bound = 1.0 / np.sqrt(in_f)
        return jax.random.uniform(k, (out_f, in_f), jnp.float32, -bound, bound)

    def init_b(k, out_f, in_f):
        bound = 1.0 / np.sqrt(in_f)
        return jax.random.uniform(k, (out_f,), jnp.float32, -bound, bound)

    params = {
        "w1": init_w(k1, hidden_sizes[0], nin),
        "b1": init_b(k2, hidden_sizes[0], nin),
        "m1": jnp.asarray(masks[0]),
        "w2": init_w(k3, hidden_sizes[1], hidden_sizes[0]),
        "b2": init_b(k4, hidden_sizes[1], hidden_sizes[0]),
        "m2": jnp.asarray(masks[1]),
        "w3": init_w(k5, out_dim, hidden_sizes[1]),
        "b3": init_b(k6, out_dim, hidden_sizes[1]),
        "m3": jnp.asarray(masks[2]),
    }

    x = jax.random.normal(kx, (B, nin), jnp.float32)

    z = jax.block_until_ready(made_forward(x, params, nin=nin, use_bf16=True))
    z_ref = jax.block_until_ready(
        made_reference(x, params, nin=nin, wdtype=jnp.bfloat16))

    np.testing.assert_allclose(np.asarray(z), np.asarray(z_ref),
                               rtol=1e-3, atol=1e-3)
    print("KERNEL_OK")
</pallas_src>

<mosaic_0001>
module attributes {stable_mosaic.version = 11 : i64} {
  func.func @made_kernel(%arg0: i32, %arg1: memref<8x256xf32, #tpu.memory_space<vmem>>, %arg2: memref<32x8xbf16, #tpu.memory_space<vmem>>, %arg3: memref<32x1xf32, #tpu.memory_space<vmem>>, %arg4: memref<32x32xbf16, #tpu.memory_space<vmem>>, %arg5: memref<32x1xf32, #tpu.memory_space<vmem>>, %arg6: memref<16x32xbf16, #tpu.memory_space<vmem>>, %arg7: memref<16x1xf32, #tpu.memory_space<vmem>>, %arg8: memref<8x256xf32, #tpu.memory_space<vmem>>) attributes {dimension_semantics = [#tpu.dimension_semantics<parallel>], iteration_bounds = array<i64: 1>, scalar_prefetch = 0 : i64, scratch_operands = 0 : i64, tpu.core_type = #tpu.core_type<tc>, window_params = [{transform_indices = @transform_0, window_bounds = array<i64: 8, 256>}, {pipeline_mode = #tpu.pipeline_mode<synchronous>, transform_indices = @transform_1, window_bounds = array<i64: 32, 8>}, {pipeline_mode = #tpu.pipeline_mode<synchronous>, transform_indices = @transform_2, window_bounds = array<i64: 32, 1>}, {pipeline_mode = #tpu.pipeline_mode<synchronous>, transform_indices = @transform_3, window_bounds = array<i64: 32, 32>}, {pipeline_mode = #tpu.pipeline_mode<synchronous>, transform_indices = @transform_4, window_bounds = array<i64: 32, 1>}, {pipeline_mode = #tpu.pipeline_mode<synchronous>, transform_indices = @transform_5, window_bounds = array<i64: 16, 32>}, {pipeline_mode = #tpu.pipeline_mode<synchronous>, transform_indices = @transform_6, window_bounds = array<i64: 16, 1>}, {transform_indices = @transform_7, window_bounds = array<i64: 8, 256>}]} {
    %c0 = arith.constant 0 : index
    %c0_0 = arith.constant 0 : index
    %0 = vector.load %arg1[%c0, %c0_0] : memref<8x256xf32, #tpu.memory_space<vmem>>, vector<8x256xf32>
    %1 = arith.truncf %0 : vector<8x256xf32> to vector<8x256xbf16>
    %c0_1 = arith.constant 0 : index
    %c0_2 = arith.constant 0 : index
    %2 = vector.load %arg2[%c0_1, %c0_2] : memref<32x8xbf16, #tpu.memory_space<vmem>>, vector<32x8xbf16>
    %cst = arith.constant dense<0.000000e+00> : vector<32x256xf32>
    %3 = tpu.matmul %2, %1, %cst {dimension_numbers = #tpu.dot_dimension_numbers<[1], [0], [0], [1], [0, 0, 1, 1], [], []>} : vector<32x8xbf16>, vector<8x256xbf16>, vector<32x256xf32> -> vector<32x256xf32>
    %c0_3 = arith.constant 0 : index
    %c0_4 = arith.constant 0 : index
    %4 = vector.load %arg3[%c0_3, %c0_4] : memref<32x1xf32, #tpu.memory_space<vmem>>, vector<32x1xf32>
    %5 = vector.broadcast %4 : vector<32x1xf32> to vector<32x256xf32>
    %6 = arith.addf %3, %5 : vector<32x256xf32>
    %cst_5 = arith.constant 0.000000e+00 : f32
    %7 = vector.broadcast %cst_5 : f32 to vector<32x256xf32>
    %8 = arith.maximumf %6, %7 : vector<32x256xf32>
    %c0_6 = arith.constant 0 : index
    %c0_7 = arith.constant 0 : index
    %9 = vector.load %arg4[%c0_6, %c0_7] : memref<32x32xbf16, #tpu.memory_space<vmem>>, vector<32x32xbf16>
    %10 = arith.truncf %8 : vector<32x256xf32> to vector<32x256xbf16>
    %cst_8 = arith.constant dense<0.000000e+00> : vector<32x256xf32>
    %11 = tpu.matmul %9, %10, %cst_8 {dimension_numbers = #tpu.dot_dimension_numbers<[1], [0], [0], [1], [0, 0, 1, 1], [], []>} : vector<32x32xbf16>, vector<32x256xbf16>, vector<32x256xf32> -> vector<32x256xf32>
    %c0_9 = arith.constant 0 : index
    %c0_10 = arith.constant 0 : index
    %12 = vector.load %arg5[%c0_9, %c0_10] : memref<32x1xf32, #tpu.memory_space<vmem>>, vector<32x1xf32>
    %13 = vector.broadcast %12 : vector<32x1xf32> to vector<32x256xf32>
    %14 = arith.addf %11, %13 : vector<32x256xf32>
    %cst_11 = arith.constant 0.000000e+00 : f32
    %15 = vector.broadcast %cst_11 : f32 to vector<32x256xf32>
    %16 = arith.maximumf %14, %15 : vector<32x256xf32>
    %c0_12 = arith.constant 0 : index
    %c0_13 = arith.constant 0 : index
    %17 = vector.load %arg6[%c0_12, %c0_13] : memref<16x32xbf16, #tpu.memory_space<vmem>>, vector<16x32xbf16>
    %18 = arith.truncf %16 : vector<32x256xf32> to vector<32x256xbf16>
    %cst_14 = arith.constant dense<0.000000e+00> : vector<16x256xf32>
    %19 = tpu.matmul %17, %18, %cst_14 {dimension_numbers = #tpu.dot_dimension_numbers<[1], [0], [0], [1], [0, 0, 1, 1], [], []>} : vector<16x32xbf16>, vector<32x256xbf16>, vector<16x256xf32> -> vector<16x256xf32>
    %c0_15 = arith.constant 0 : index
    %c0_16 = arith.constant 0 : index
    %20 = vector.load %arg7[%c0_15, %c0_16] : memref<16x1xf32, #tpu.memory_space<vmem>>, vector<16x1xf32>
    %21 = vector.broadcast %20 : vector<16x1xf32> to vector<16x256xf32>
    %22 = arith.addf %19, %21 : vector<16x256xf32>
    %23 = vector.extract_strided_slice %22 {offsets = [0, 0], sizes = [8, 256], strides = [1, 1]} : vector<16x256xf32> to vector<8x256xf32>
    %24 = vector.extract_strided_slice %22 {offsets = [8, 0], sizes = [8, 256], strides = [1, 1]} : vector<16x256xf32> to vector<8x256xf32>
    %25 = arith.subf %0, %23 : vector<8x256xf32>
    %cst_17 = arith.constant 0.000000e+00 : f32
    %26 = vector.broadcast %cst_17 : f32 to vector<8x256xf32>
    %27 = arith.subf %26, %24 : vector<8x256xf32>
    %28 = math.exp %27 : vector<8x256xf32>
    %29 = arith.mulf %25, %28 : vector<8x256xf32>
    %c0_18 = arith.constant 0 : index
    %c0_19 = arith.constant 0 : index
    %30 = vector.load %arg8[%c0_18, %c0_19] : memref<8x256xf32, #tpu.memory_space<vmem>>, vector<8x256xf32>
    tpu.vector_store %arg8[%c0_18, %c0_19], %29 {strides = array<i32>} : memref<8x256xf32, #tpu.memory_space<vmem>>, vector<8x256xf32>,
    return
  }
  func.func @transform_0(%arg0: i32) -> (i32, i32) {
    %c0_i32 = arith.constant 0 : i32
    %c0_i32_0 = arith.constant 0 : i32
    return %c0_i32, %arg0 : i32, i32
  }
  func.func @transform_1(%arg0: i32) -> (i32, i32) {
    %c0_i32 = arith.constant 0 : i32
    %c0_i32_0 = arith.constant 0 : i32
    %c0_i32_1 = arith.constant 0 : i32
    return %c0_i32, %c0_i32_0 : i32, i32
  }
  func.func @transform_2(%arg0: i32) -> (i32, i32) {
    %c0_i32 = arith.constant 0 : i32
    %c0_i32_0 = arith.constant 0 : i32
    %c0_i32_1 = arith.constant 0 : i32
    return %c0_i32, %c0_i32_0 : i32, i32
  }
  func.func @transform_3(%arg0: i32) -> (i32, i32) {
    %c0_i32 = arith.constant 0 : i32
    %c0_i32_0 = arith.constant 0 : i32
    %c0_i32_1 = arith.constant 0 : i32
    return %c0_i32, %c0_i32_0 : i32, i32
  }
  func.func @transform_4(%arg0: i32) -> (i32, i32) {
    %c0_i32 = arith.constant 0 : i32
    %c0_i32_0 = arith.constant 0 : i32
    %c0_i32_1 = arith.constant 0 : i32
    return %c0_i32, %c0_i32_0 : i32, i32
  }
  func.func @transform_5(%arg0: i32) -> (i32, i32) {
    %c0_i32 = arith.constant 0 : i32
    %c0_i32_0 = arith.constant 0 : i32
    %c0_i32_1 = arith.constant 0 : i32
    return %c0_i32, %c0_i32_0 : i32, i32
  }
  func.func @transform_6(%arg0: i32) -> (i32, i32) {
    %c0_i32 = arith.constant 0 : i32
    %c0_i32_0 = arith.constant 0 : i32
    %c0_i32_1 = arith.constant 0 : i32
    return %c0_i32, %c0_i32_0 : i32, i32
  }
  func.func @transform_7(%arg0: i32) -> (i32, i32) {
    %c0_i32 = arith.constant 0 : i32
    %c0_i32_0 = arith.constant 0 : i32
    return %c0_i32, %arg0 : i32, i32
  }
}

</mosaic_0001>

<llo_original>
// kernel: tpu_custom_call.1
$region0: #{tpu_custom_call.1}
  #allocation0 [shape = 'u32[]', space=smem, size = 0x4, offset = 0x4, fixed_abs, tag = 'smem constant byte address 0x4 - core index']
  #allocation1 [shape = 'u32[144,128]{1,0:T(1,128)}', space=vmem, size = 0x12000, scoped, tag = 'internal scratch']
  %s0 = inlined_call_operand.vmem [shape: f32[8,256], index: 0, kind: input, shape index: {}]
  %s1 = inlined_call_operand.vmem [shape: bf16[32,8], index: 1, kind: input, shape index: {}]
  %s2 = inlined_call_operand.vmem [shape: f32[32,1], index: 2, kind: input, shape index: {}]
  %s3 = inlined_call_operand.vmem [shape: bf16[32,32], index: 3, kind: input, shape index: {}]
  %s4 = inlined_call_operand.vmem [shape: f32[32,1], index: 4, kind: input, shape index: {}]
  %s5 = inlined_call_operand.vmem [shape: bf16[16,32], index: 5, kind: input, shape index: {}]
  %s6 = inlined_call_operand.vmem [shape: f32[16,1], index: 6, kind: input, shape index: {}]
  %s7 = inlined_call_operand.hbm [shape: f32[8,256], index: 7, kind: output, shape index: {}]
  %s8 = sld [smem:[#allocation0]]
  $region38: #{tpu_custom_call.1} parent=0
    _
  %s10 = ssub.s32 1, %s8
  %s11 = scalar_select 0, %s10, %s8
  $region1: #{tpu_custom_call.1} parent=0
    #allocation2 [shape = 'u8[8192]{0}', space=vmem, size = 0x2000, scoped, tag = 'output window, operand 0, single buffered']
    #allocation3 [shape = 's32[1]{0}', space=sflag, size = 0x4, scoped, tag = 'scoped memory for tpu_custom_call.1']
    %12 = vsyncpa [#allocation3], 0
    // Predicated region
    $region2: #{tpu_custom_call.1} parent=1 // pred_check
      _
    $region3: #{tpu_custom_call.1} parent=1 // pred_check_branch
      %14 = sbr.rel (0) target = $region5
    $region4: #{tpu_custom_call.1} parent=1 // pred_region
      _
    $region5: #{tpu_custom_call.1} parent=1 // pred_fallthru
      _
    // Predicated region
    $region6: #{tpu_custom_call.1} parent=1 // pred_check
      _
    $region7: #{tpu_custom_call.1} parent=1 // pred_check_branch
      %16 = sbr.rel (0) target = $region9
    $region8: #{tpu_custom_call.1} parent=1 // pred_region
      _
    $region9: #{tpu_custom_call.1} parent=1 // pred_fallthru
      _
    // Predicated region
    $region10: #{tpu_custom_call.1} parent=1 // pred_check
      _
    $region11: #{tpu_custom_call.1} parent=1 // pred_check_branch
      %18 = sbr.rel (0) target = $region13
    $region12: #{tpu_custom_call.1} parent=1 // pred_region
      _
    $region13: #{tpu_custom_call.1} parent=1 // pred_fallthru
      _
    // Predicated region
    $region14: #{tpu_custom_call.1} parent=1 // pred_check
      _
    $region15: #{tpu_custom_call.1} parent=1 // pred_check_branch
      %20 = sbr.rel (0) target = $region17
    $region16: #{tpu_custom_call.1} parent=1 // pred_region
      _
    $region17: #{tpu_custom_call.1} parent=1 // pred_fallthru
      _
    // Predicated region
    $region18: #{tpu_custom_call.1} parent=1 // pred_check
      _
    $region19: #{tpu_custom_call.1} parent=1 // pred_check_branch
      %22 = sbr.rel (0) target = $region21
    $region20: #{tpu_custom_call.1} parent=1 // pred_region
      _
    $region21: #{tpu_custom_call.1} parent=1 // pred_fallthru
      _
    // Predicated region
    $region22: #{tpu_custom_call.1} parent=1 // pred_check
      _
    $region23: #{tpu_custom_call.1} parent=1 // pred_check_branch
      %24 = sbr.rel (0) target = $region25
    $region24: #{tpu_custom_call.1} parent=1 // pred_region
      _
    $region25: #{tpu_custom_call.1} parent=1 // pred_fallthru
      _
    // Predicated region
    $region26: #{tpu_custom_call.1} parent=1 // pred_check
      _
    $region27: #{tpu_custom_call.1} parent=1 // pred_check_branch
      %26 = sbr.rel (0) target = $region29
    $region28: #{tpu_custom_call.1} parent=1 // pred_region
      _
    $region29: #{tpu_custom_call.1} parent=1 // pred_fallthru
      _
    %v28 = vld [vmem:[%s0] sm:$0xff]
    %v29 = vld [vmem:[%s0 + $0x8] sm:$0xff]
    %v30 = vpack.c.bf16 %v28, %v28
    %v31 = vpack.c.bf16 %v29, %v29
    %v32 = vld [vmem:[%s1] sm:$0xf]
    %v33 = vld [vmem:[%s1 + $0x4] sm:$0xf]
    %v34 = vld [vmem:[%s1 + $0x8] sm:$0xf]
    %v35 = vld [vmem:[%s1 + $0xc] sm:$0xf]
    %v36 = vld [vmem:[%s2] sm:$0xff]
    %v37 = vld [vmem:[%s2 + $0x8] sm:$0xff]
    %v38 = vld [vmem:[%s2 + $0x10] sm:$0xff]
    %v39 = vld [vmem:[%s2 + $0x18] sm:$0xff]
    %41 = vset.pattern.permute.xlu0 0
    %42 = vperm.xlu0 %41, %v36
    %v43 = vpop.permute.xlu0 %42
    %46 = vset.pattern.permute.xlu0 0
    %47 = vperm.xlu0 %46, %v37
    %v48 = vpop.permute.xlu0 %47
    %51 = vset.pattern.permute.xlu0 0
    %52 = vperm.xlu0 %51, %v38
    %v53 = vpop.permute.xlu0 %52
    %56 = vset.pattern.permute.xlu0 0
    %57 = vperm.xlu0 %56, %v39
    %v58 = vpop.permute.xlu0 %57
    %v64 = vunpack.c.l.b16 %v32
    %v65 = vunpack.c.l.b16 %v33
    %v66 = vunpack.c.l.b16 %v34
    %v67 = vunpack.c.l.b16 %v35
    %v68 = vpack.c.b16 %v65, %v64
    %v69 = vpack.c.b16 %v67, %v66
    %vm70 = vcmask 64512
    %v72 = vsel %vm70, %v68, 0
    %v75 = vsel %vm70, %v69, 0
    %vm77 = vcmask 1043456
    %v79 = vsel %vm77, %v30, 0
    %v82 = vsel %vm77, %v31, 0
    %84 = vmatprep.subr.bf16.mxu0 %v82
    %85 = vmatpush1.bf16.msra.mxu0 %v79
    %86 = vmatprep.subr.bf16.mxu0 0
    %87 = vmatpush1.bf16.msra.mxu0 0
    %88 = vmatprep.subr.bf16.mxu0 0
    %89 = vmatpush1.bf16.msra.mxu0 0
    %90 = vmatprep.subr.bf16.mxu0 0
    %91 = vmatpush1.bf16.msra.mxu0 0
    %92 = vmatprep.subr.bf16.mxu0 0
    %93 = vmatpush1.bf16.msra.mxu0 0
    %94 = vmatprep.subr.bf16.mxu0 0
    %95 = vmatpush1.bf16.msra.mxu0 0
    %96 = vmatprep.subr.bf16.mxu0 0
    %97 = vmatpush1.bf16.msra.mxu0 0
    %98 = vmatprep.subr.bf16.mxu0 0
    %99 = vmatpush1.bf16.msra.mxu0 0
    %100 = vmatprep.subr.bf16.mxu0 0
    %101 = vmatpush1.bf16.msra.mxu0 0
    %102 = vmatprep.subr.bf16.mxu0 0
    %103 = vmatpush1.bf16.msra.mxu0 0
    %104 = vmatprep.subr.bf16.mxu0 0
    %105 = vmatpush1.bf16.msra.mxu0 0
    %106 = vmatprep.subr.bf16.mxu0 0
    %107 = vmatpush1.bf16.msra.mxu0 0
    %108 = vmatprep.subr.bf16.mxu0 0
    %109 = vmatpush1.bf16.msra.mxu0 0
    %110 = vmatprep.subr.bf16.mxu0 0
    %111 = vmatpush1.bf16.msra.mxu0 0
    %112 = vmatprep.subr.bf16.mxu0 0
    %113 = vmatpush1.bf16.msra.mxu0 0
    %114 = vmatprep.subr.bf16.mxu0 0
    %115 = vmatpush1.bf16.msra.mxu0 0
    %116 = vmatprep.mubr.bf16.mxu0 0
    %117 = vmatmul.mubr.bf16.gmra.mrb[0].mxu0 %v72
    %v118 = vpop.f32.mrb[0].mxu0
    %v119 = vadd.f32 %v43, %v118
    %v120 = vpop.f32.mrb[0].mxu0
    %v121 = vadd.f32 %v43, %v120
    %v122 = vpop.f32.mrb[0].mxu0
    %v123 = vadd.f32 %v48, %v122
    %v124 = vpop.f32.mrb[0].mxu0
    %v125 = vadd.f32 %v48, %v124
    %126 = vmatprep.mubr.bf16.mxu0 0
    %127 = vmatmul.mubr.bf16.gmra.mrb[0].mxu0 %v75
    %v128 = vpop.f32.mrb[0].mxu0
    %v129 = vadd.f32 %v53, %v128
    %v130 = vpop.f32.mrb[0].mxu0
    %v131 = vadd.f32 %v53, %v130
    %v132 = vpop.f32.mrb[0].mxu0
    %v133 = vadd.f32 %v58, %v132
    %v134 = vpop.f32.mrb[0].mxu0
    %v135 = vadd.f32 %v58, %v134
    %136 = vdwg.mxu0
    %v137 = vmax.f32 %v119, 0.0
    %v138 = vmax.f32 %v121, 0.0
    %v139 = vmax.f32 %v123, 0.0
    %v140 = vmax.f32 %v125, 0.0
    %v141 = vmax.f32 %v129, 0.0
    %v142 = vmax.f32 %v131, 0.0
    %v143 = vmax.f32 %v133, 0.0
    %v144 = vmax.f32 %v135, 0.0
    %v145 = vld [vmem:[%s3] sm:$0xf]
    %v146 = vld [vmem:[%s3 + $0x4] sm:$0xf]
    %v147 = vld [vmem:[%s3 + $0x8] sm:$0xf]
    %v148 = vld [vmem:[%s3 + $0xc] sm:$0xf]
    %v149 = vpack.c.bf16 %v139, %v137
    %v150 = vpack.c.bf16 %v140, %v138
    %v151 = vpack.c.bf16 %v143, %v141
    %v152 = vpack.c.bf16 %v144, %v142
    %v153 = vld [vmem:[%s4] sm:$0xff]
    %v154 = vld [vmem:[%s4 + $0x8] sm:$0xff]
    %v155 = vld [vmem:[%s4 + $0x10] sm:$0xff]
    %v156 = vld [vmem:[%s4 + $0x18] sm:$0xff]
    %158 = vset.pattern.permute.xlu0 0
    %159 = vperm.xlu0 %158, %v153
    %v160 = vpop.permute.xlu0 %159
    %163 = vset.pattern.permute.xlu0 0
    %164 = vperm.xlu0 %163, %v154
    %v165 = vpop.permute.xlu0 %164
    %168 = vset.pattern.permute.xlu0 0
    %169 = vperm.xlu0 %168, %v155
    %v170 = vpop.permute.xlu0 %169
    %173 = vset.pattern.permute.xlu0 0
    %174 = vperm.xlu0 %173, %v156
    %v175 = vpop.permute.xlu0 %174
    %v181 = vunpack.c.l.b16 %v145
    %v182 = vunpack.c.l.b16 %v146
    %v183 = vunpack.c.l.b16 %v147
    %v184 = vunpack.c.l.b16 %v148
    %v185 = vpack.c.b16 %v182, %v181
    %v186 = vpack.c.b16 %v184, %v183
    %vm187 = vcmask 261120
    %v189 = vsel %vm187, %v185, 0
    %v192 = vsel %vm187, %v186, 0
    %194 = vmatprep.subr.bf16.mxu0 %v150
    %195 = vmatpush1.bf16.msra.mxu0 %v149
    %196 = vmatprep.subr.bf16.mxu0 %v152
    %197 = vmatpush1.bf16.msra.mxu0 %v151
    %198 = vmatprep.subr.bf16.mxu0 0
    %199 = vmatpush1.bf16.msra.mxu0 0
    %200 = vmatprep.subr.bf16.mxu0 0
    %201 = vmatpush1.bf16.msra.mxu0 0
    %202 = vmatprep.subr.bf16.mxu0 0
    %203 = vmatpush1.bf16.msra.mxu0 0
    %204 = vmatprep.subr.bf16.mxu0 0
    %205 = vmatpush1.bf16.msra.mxu0 0
    %206 = vmatprep.subr.bf16.mxu0 0
    %207 = vmatpush1.bf16.msra.mxu0 0
    %208 = vmatprep.subr.bf16.mxu0 0
    %209 = vmatpush1.bf16.msra.mxu0 0
    %210 = vmatprep.subr.bf16.mxu0 0
    %211 = vmatpush1.bf16.msra.mxu0 0
    %212 = vmatprep.subr.bf16.mxu0 0
    %213 = vmatpush1.bf16.msra.mxu0 0
    %214 = vmatprep.subr.bf16.mxu0 0
    %215 = vmatpush1.bf16.msra.mxu0 0
    %216 = vmatprep.subr.bf16.mxu0 0
    %217 = vmatpush1.bf16.msra.mxu0 0
    %218 = vmatprep.subr.bf16.mxu0 0
    %219 = vmatpush1.bf16.msra.mxu0 0
    %220 = vmatprep.subr.bf16.mxu0 0
    %221 = vmatpush1.bf16.msra.mxu0 0
    %222 = vmatprep.subr.bf16.mxu0 0
    %223 = vmatpush1.bf16.msra.mxu0 0
    %224 = vmatprep.subr.bf16.mxu0 0
    %225 = vmatpush1.bf16.msra.mxu0 0
    %226 = vmatprep.mubr.bf16.mxu0 0
    %227 = vmatmul.mubr.bf16.gmra.mrb[0].mxu0 %v189
    %v228 = vpop.f32.mrb[0].mxu0
    %v229 = vadd.f32 %v160, %v228
    %v230 = vpop.f32.mrb[0].mxu0
    %v231 = vadd.f32 %v160, %v230
    %v232 = vpop.f32.mrb[0].mxu0
    %v233 = vadd.f32 %v165, %v232
    %v234 = vpop.f32.mrb[0].mxu0
    %v235 = vadd.f32 %v165, %v234
    %236 = vmatprep.mubr.bf16.mxu0 0
    %237 = vmatmul.mubr.bf16.gmra.mrb[0].mxu0 %v192
    %v238 = vpop.f32.mrb[0].mxu0
    %v239 = vadd.f32 %v170, %v238
    %v240 = vpop.f32.mrb[0].mxu0
    %v241 = vadd.f32 %v170, %v240
    %v242 = vpop.f32.mrb[0].mxu0
    %v243 = vadd.f32 %v175, %v242
    %v244 = vpop.f32.mrb[0].mxu0
    %v245 = vadd.f32 %v175, %v244
    %246 = vdwg.mxu0
    %v247 = vmax.f32 %v229, 0.0
    %v248 = vmax.f32 %v231, 0.0
    %v249 = vmax.f32 %v233, 0.0
    %v250 = vmax.f32 %v235, 0.0
    %v251 = vmax.f32 %v239, 0.0
    %v252 = vmax.f32 %v241, 0.0
    %v253 = vmax.f32 %v243, 0.0
    %v254 = vmax.f32 %v245, 0.0
    %v255 = vld [vmem:[%s5] sm:$0xf]
    %v256 = vld [vmem:[%s5 + $0x4] sm:$0xf]
    %v257 = vpack.c.bf16 %v249, %v247
    %v258 = vpack.c.bf16 %v250, %v248
    %v259 = vpack.c.bf16 %v253, %v251
    %v260 = vpack.c.bf16 %v254, %v252
    %v261 = vld [vmem:[%s6] sm:$0xff]
    %v262 = vld [vmem:[%s6 + $0x8] sm:$0xff]
    %264 = vset.pattern.permute.xlu0 0
    %265 = vperm.xlu0 %264, %v261
    %v266 = vpop.permute.xlu0 %265
    %269 = vset.pattern.permute.xlu0 0
    %270 = vperm.xlu0 %269, %v262
    %v271 = vpop.permute.xlu0 %270
    %v275 = vunpack.c.l.b16 %v255
    %v276 = vunpack.c.l.b16 %v256
    %v277 = vpack.c.b16 %v276, %v275
    %v279 = vsel %vm187, %v277, 0
    %281 = vmatprep.subr.bf16.mxu0 %v258
    %282 = vmatpush1.bf16.msra.mxu0 %v257
    %283 = vmatprep.subr.bf16.mxu0 %v260
    %284 = vmatpush1.bf16.msra.mxu0 %v259
    %285 = vmatprep.subr.bf16.mxu0 0
    %286 = vmatpush1.bf16.msra.mxu0 0
    %287 = vmatprep.subr.bf16.mxu0 0
    %288 = vmatpush1.bf16.msra.mxu0 0
    %289 = vmatprep.subr.bf16.mxu0 0
    %290 = vmatpush1.bf16.msra.mxu0 0
    %291 = vmatprep.subr.bf16.mxu0 0
    %292 = vmatpush1.bf16.msra.mxu0 0
    %293 = vmatprep.subr.bf16.mxu0 0
    %294 = vmatpush1.bf16.msra.mxu0 0
    %295 = vmatprep.subr.bf16.mxu0 0
    %296 = vmatpush1.bf16.msra.mxu0 0
    %297 = vmatprep.subr.bf16.mxu0 0
    %298 = vmatpush1.bf16.msra.mxu0 0
    %299 = vmatprep.subr.bf16.mxu0 0
    %300 = vmatpush1.bf16.msra.mxu0 0
    %301 = vmatprep.subr.bf16.mxu0 0
    %302 = vmatpush1.bf16.msra.mxu0 0
    %303 = vmatprep.subr.bf16.mxu0 0
    %304 = vmatpush1.bf16.msra.mxu0 0
    %305 = vmatprep.subr.bf16.mxu0 0
    %306 = vmatpush1.bf16.msra.mxu0 0
    %307 = vmatprep.subr.bf16.mxu0 0
    %308 = vmatpush1.bf16.msra.mxu0 0
    %309 = vmatprep.subr.bf16.mxu0 0
    %310 = vmatpush1.bf16.msra.mxu0 0
    %311 = vmatprep.subr.bf16.mxu0 0
    %312 = vmatpush1.bf16.msra.mxu0 0
    %313 = vmatprep.mubr.bf16.mxu0 0
    %314 = vmatmul.mubr.bf16.gmra.mrb[0].mxu0 %v279
    %v315 = vpop.f32.mrb[0].mxu0
    %v316 = vadd.f32 %v266, %v315
    %v317 = vpop.f32.mrb[0].mxu0
    %v318 = vadd.f32 %v266, %v317
    %v319 = vpop.f32.mrb[0].mxu0
    %v320 = vadd.f32 %v271, %v319
    %v321 = vpop.f32.mrb[0].mxu0
    %v322 = vadd.f32 %v271, %v321
    %323 = vdwg.mxu0
    %v324 = vsub.f32 %v28, %v316
    %v325 = vsub.f32 %v29, %v318
    %v326 = vsub.f32 0.0, %v320
    %v327 = vsub.f32 0.0, %v322
    %v328 = vmul.f32 %v326, 1.442695
    %v329 = vpow.pop %v328
    %v330 = vmul.f32 %v327, 1.442695
    %v331 = vpow.pop %v330
    %v332 = vmul.f32 %v324, %v329
    %v333 = vmul.f32 %v325, %v331
    %334 = vst [vmem:[#allocation2] sm:$0xff] %v332
    %335 = vst [vmem:[#allocation2 + $0x8] sm:$0xff] %v333
    // Predicated region
    $region30: #{tpu_custom_call.1} parent=1 // pred_check
      _
    $region31: #{tpu_custom_call.1} parent=1 // pred_check_branch
      %337 = sbr.rel (0) target = $region33
    $region32: #{tpu_custom_call.1} parent=1 // pred_region
      %s339 = ssub.s32 256, 256
      %340 = vsyncadd [#allocation3], %s339
      %s342 = sshll.u32 [#allocation2], 4
      %s343 = int_to_ptr.vmem [resolvable:$true] %s342
      %345 = dma.vmem_to_hbm [thread:$0]  %s343, 256, %s7, [#allocation3]
    $region33: #{tpu_custom_call.1} parent=1 // pred_fallthru
      _
    // Predicated region
    $region34: #{tpu_custom_call.1} parent=1 // pred_check
      _
    $region35: #{tpu_custom_call.1} parent=1 // pred_check_branch
      %347 = sbr.rel (0) target = $region37
    $region36: #{tpu_custom_call.1} parent=1 // pred_region
      %348 = dma.done [#allocation3], 256
    $region37: #{tpu_custom_call.1} parent=1 // pred_fallthru
      _
    %349 = vsyncpa [#allocation3], 1

</llo_original>
